<compile_context>
chip_gen: v7x
topology: tpu7x:2x2x1
jax: 0.10.0
libtpu: 0.0.40
codegen_flags: <defaults>
</compile_context>

<pallas_src>
import functools
import math
from typing import Any, NamedTuple, Tuple

import jax
import jax.numpy as jnp
from jax.experimental import pallas as pl
from jax.experimental.pallas import tpu as pltpu

_LANE = 128      # vreg lane width
_SUBLANE = 8     # f32 sublane tile


def _round_up(x, m):
    return ((x + m - 1) // m) * m


def _pad2(a, rows, cols):
    pr, pc = rows - a.shape[0], cols - a.shape[1]
    return jnp.pad(a, ((0, pr), (0, pc))) if (pr or pc) else a


def _vmem_budget_bytes():
    """Per-generation usable VMEM (physical capacity minus scratch headroom)."""
    cap = 64 * 1024 * 1024  # conservative default (v7x per-TC physical)
    try:
        info = pltpu.get_tpu_info()
        cap = int(getattr(info, "vmem_capacity_bytes", cap))
    except Exception:
        pass
    return max(cap - 8 * 1024 * 1024, 32 * 1024 * 1024)


# ----------------------------- kernel ---------------------------------------

def _apply_activation(name, x):
    """Activation dispatch (resolved at trace time, `name` is a Python str)."""
    if name == "tanh":
        return jnp.tanh(x)
    if name == "sigmoid":
        return jax.nn.sigmoid(x)
    if name == "ReLU":
        return jnp.maximum(x, 0.0)
    if name == "leakyReLU":
        return jnp.where(x >= 0, x, 0.01 * x)        # PyTorch LeakyReLU default slope
    if name == "ELU":
        return jnp.where(x >= 0, x, jnp.expm1(x))    # PyTorch ELU default alpha=1
    raise ValueError(f"Unknown activation {name}")


def _mlp_kernel(activation, n_hidden, compute_dtype, *refs):
    """Full MLP forward for one batch tile; all weights are VMEM-resident.

    refs = (x_ref, w0, b0, w1, b1, ..., w_out, b_out, o_ref)
    """
    x_ref = refs[0]
    o_ref = refs[-1]
    params = refs[1:-1]

    h = x_ref[...]                                    # compute_dtype (bf16)
    z = None
    for i in range(n_hidden + 1):
        w = params[2 * i][...]                        # bf16 [in(_pad), out_pad]
        b = params[2 * i + 1][...]                    # f32  [1, out_pad]
        z = jnp.dot(h, w, preferred_element_type=jnp.float32) + b   # MXU, f32 acc
        if i < n_hidden:
            # bf16 activation: roughly 2x EUP throughput on v6e/v7x, and keeps
            # the inter-layer h in bf16 (no per-layer f32<->bf16 round trip).
            h = _apply_activation(activation, z.astype(compute_dtype))
    o_ref[...] = z.astype(o_ref.dtype)


# ----------------------------- packing ---------------------------------------

class PackedParams(NamedTuple):
    tensors: Tuple[Any, ...]   # (W0, b0, ..., Wout, bout), lane-padded, bf16 W / f32 b
    n_in: int
    n_out: int
    cdims: Tuple[int, ...]     # lane-padded output width of each layer
    compute_dtype: Any


def pack_params(params, compute_dtype=jnp.bfloat16):
    """One-time pack: pad feature dims to full lanes, cast weights to bf16.

    params : [W0, b0, W1, b1, ..., Wout, bout] with Wi stored [in, out]
             (transposed vs PyTorch nn.Linear [out, in]), bi [1, out] or [out].

    Padding invariant: padded *columns* of layer i (which produce activation(0),
    possibly nonzero, e.g. sigmoid(0)=0.5) are neutralized because the padded
    *rows* of W_{i+1} are zero by construction here.
    """
    n_hidden = (len(params) - 2) // 2
    n_in = int(params[0].shape[0])
    n_out = int(params[-1].shape[-1])
    out_dims = [int(params[2 * i].shape[1]) for i in range(n_hidden + 1)]
    cdims = [_round_up(d, _LANE) for d in out_dims]

    tensors = []
    for i in range(n_hidden + 1):
        in_rows = n_in if i == 0 else cdims[i - 1]    # first layer keeps true n_in rows
        w = jnp.asarray(params[2 * i], dtype=jnp.float32)
        b = jnp.asarray(params[2 * i + 1], dtype=jnp.float32).reshape(1, -1)
        w = _pad2(w, in_rows, cdims[i]).astype(compute_dtype)
        b = _pad2(b, 1, cdims[i]).astype(jnp.float32)
        tensors += [w, b]
    return PackedParams(tuple(tensors), n_in, n_out, tuple(cdims), compute_dtype)


# ----------------------------- wrapper ---------------------------------------

def parametric_net_forward(x, packed: PackedParams, activation, *, batch_tile=None):
    """Run the ParametricNet forward pass via one pallas_call.

    x      : [B, nInputs] float32 (or bf16)
    packed : output of pack_params()
    """
    tensors = list(packed.tensors)
    n_in, n_out = packed.n_in, packed.n_out
    cdims = list(packed.cdims)
    compute_dtype = packed.compute_dtype
    n_hidden = len(cdims) - 1

    B = x.shape[0]
    assert x.shape[1] == n_in, (x.shape, n_in)

    budget = _vmem_budget_bytes()
    param_bytes = sum(int(p.size) * p.dtype.itemsize for p in tensors)
    cd_itemsize = jnp.dtype(compute_dtype).itemsize

    def _vmem_est(tb, weight_bufs):
        x_b = 2 * tb * n_in * cd_itemsize              # double-buffered x tile
        o_b = 2 * tb * cdims[-1] * cd_itemsize         # double-buffered out tile
        h_b = 2 * tb * max([n_in] + cdims) * 4         # live f32 z + bf16 h margin
        return int(1.25 * (weight_bufs * param_bytes + x_b + o_b + h_b))

    # ---- batch tiling: fill MXU M dim; >=2 parallel steps whenever possible ----
    B_pad0 = _round_up(B, _SUBLANE)
    if batch_tile is not None:
        tb = max(_SUBLANE, _round_up(min(batch_tile, B_pad0), _SUBLANE))
    elif B_pad0 < 16:
        tb = B_pad0
    else:
        # At least two grid steps (both v7x TensorCores get work); up to 512 rows
        # per tile on chips whose VMEM budget allows it (v5e/v6e roofline sweet spot).
        tb = min(_round_up(-(-B_pad0 // 2), _SUBLANE), 512)
        while tb > _SUBLANE and _vmem_est(tb, 1) > budget:
            tb = _round_up(tb // 2, _SUBLANE)
    B_pad = _round_up(B_pad0, tb)

    # x is streamed in compute dtype (halves HBM traffic vs f32); feature dim is
    # left unpadded (block last dim == full array dim is legal).
    x_p = x.astype(compute_dtype)
    if B_pad != B:
        x_p = jnp.pad(x_p, ((0, B_pad - B), (0, 0)))

    grid = (B_pad // tb,)

    # ---- cost hint for the surrounding XLA schedule ----
    flops = 2 * B_pad * (n_in * cdims[0]
                         + sum(cdims[i] * cdims[i + 1] for i in range(n_hidden)))
    trans = B_pad * sum(cdims[:-1]) if activation in ("tanh", "sigmoid", "ELU") else 0
    bytes_acc = (int(x_p.size) * cd_itemsize + param_bytes
                 + B_pad * cdims[-1] * cd_itemsize)

    kernel = functools.partial(_mlp_kernel, activation, n_hidden, compute_dtype)

    # TODO(synk): if param_bytes alone exceeds the per-generation VMEM budget
    # (very deep/wide nets, mostly on v7x's 64 MiB), switch to a layer-streaming
    # plan (double-buffer W_i from HBM) instead of the all-weights-resident plan.

    def _run(single_weight_buffer):
        # Grid-invariant weight blocks: single-buffer them (nothing to prefetch).
        wkw = dict(pipeline_mode=pl.Buffered(1)) if single_weight_buffer else {}
        in_specs = [pl.BlockSpec((tb, n_in), lambda i: (i, 0))]
        for p in tensors:
            in_specs.append(pl.BlockSpec(p.shape, lambda i: (0, 0), **wkw))
        out_spec = pl.BlockSpec((tb, cdims[-1]), lambda i: (i, 0))

        est = _vmem_est(tb, 1 if single_weight_buffer else 2)
        vmem_limit = int(min(max(est, 32 * 1024 * 1024), budget))

        return pl.pallas_call(
            kernel,
            out_shape=jax.ShapeDtypeStruct((B_pad, cdims[-1]), compute_dtype),
            grid_spec=pltpu.PrefetchScalarGridSpec(
                num_scalar_prefetch=0,
                grid=grid,
                in_specs=in_specs,
                out_specs=out_spec,
            ),
            compiler_params=pltpu.CompilerParams(
                dimension_semantics=("parallel",),
                vmem_limit_bytes=vmem_limit,
            ),
            cost_estimate=pl.CostEstimate(
                flops=int(flops), transcendentals=int(trans),
                bytes_accessed=int(bytes_acc)),
        )(x_p, *tensors)

    try:
        out_p = _run(True)
    except Exception:
        # Installed JAX may not support Buffered(1) on pallas_call BlockSpecs;
        # fall back to default double-buffering (correct, just more VMEM).
        out_p = _run(False)

    # Strip batch / lane padding back to the logical shape; return f32 like the module.
    return out_p[:B, :n_out].astype(jnp.float32)


# ------------------------ deterministic init ---------------------------------

def init_parametric_net(key, n_inputs, n_outputs, n_layers, hidden_size):
    """Mirror ParametricNet.init_weights: W ~ U(-1/sqrt(fan_in), 1/sqrt(fan_in)), b = 0.

    Weights are stored [in, out] (transposed vs PyTorch nn.Linear [out, in]).
    """
    params = []
    last = n_inputs
    for _ in range(n_layers):
        key, k = jax.random.split(key)
        y = 1.0 / math.sqrt(last)
        w = jax.random.uniform(k, (last, hidden_size), minval=-y, maxval=y,
                               dtype=jnp.float32)
        b = jnp.zeros((1, hidden_size), jnp.float32)
        params += [w, b]
        last = hidden_size
    key, k = jax.random.split(key)
    y = 1.0 / math.sqrt(last)
    w = jax.random.uniform(k, (last, n_outputs), minval=-y, maxval=y,
                           dtype=jnp.float32)
    b = jnp.zeros((1, n_outputs), jnp.float32)
    params += [w, b]
    return params


def _reference_forward(x, params, activation):
    """Pure-JAX f32 reference (same math as the PyTorch module)."""
    n_hidden = (len(params) - 2) // 2
    h = x
    for i in range(n_hidden):
        h = _apply_activation(activation, h @ params[2 * i] + params[2 * i + 1])
    return h @ params[2 * n_hidden] + params[2 * n_hidden + 1]


# ----------------------------- main -------------------------------------------

if __name__ == "__main__":
    # Small ParametricNet: nInputs=32, nOutputs=8,
    # HiddenLayers(nLayers=2, size=32, activation='tanh'), batch=8.
    B, N_IN, N_OUT = 8, 32, 8
    N_LAYERS, HIDDEN = 2, 32
    ACTIVATION = "tanh"

    key = jax.random.PRNGKey(0)
    key, kx = jax.random.split(key)
    x = jax.random.normal(kx, (B, N_IN), dtype=jnp.float32)

    params = init_parametric_net(key, N_IN, N_OUT, N_LAYERS, HIDDEN)

    # One-time pack (lane padding + bf16 cast hoisted out of the forward path).
    packed = pack_params(params)

    out = parametric_net_forward(x, packed, ACTIVATION)
    out = jax.block_until_ready(out)

    # Pure-f32 reference; tolerance absorbs bf16 rounding of x / weights /
    # inter-layer activations (outputs here are O(0.3), errors are O(1e-3)).
    ref = _reference_forward(x, params, ACTIVATION)

    assert out.shape == (B, N_OUT)
    max_err = float(jnp.max(jnp.abs(out - ref)))
    assert jnp.allclose(out, ref, atol=2e-2, rtol=2e-2), \
        f"mismatch vs reference (max abs err {max_err})"

    print("KERNEL_OK")
</pallas_src>

<mosaic_0001>
module attributes {stable_mosaic.version = 11 : i64} {
  func.func @_mlp_kernel(%arg0: i32, %arg1: memref<8x32xbf16, #tpu.memory_space<vmem>>, %arg2: memref<32x128xbf16, #tpu.memory_space<vmem>>, %arg3: memref<1x128xf32, #tpu.memory_space<vmem>>, %arg4: memref<128x128xbf16, #tpu.memory_space<vmem>>, %arg5: memref<1x128xf32, #tpu.memory_space<vmem>>, %arg6: memref<128x128xbf16, #tpu.memory_space<vmem>>, %arg7: memref<1x128xf32, #tpu.memory_space<vmem>>, %arg8: memref<8x128xbf16, #tpu.memory_space<vmem>>) attributes {dimension_semantics = [#tpu.dimension_semantics<parallel>], iteration_bounds = array<i64: 1>, scalar_prefetch = 0 : i64, scratch_operands = 0 : i64, tpu.core_type = #tpu.core_type<tc>, window_params = [{transform_indices = @transform_0, window_bounds = array<i64: 8, 32>}, {pipeline_mode = #tpu.pipeline_mode<synchronous>, transform_indices = @transform_1, window_bounds = array<i64: 32, 128>}, {pipeline_mode = #tpu.pipeline_mode<synchronous>, transform_indices = @transform_2, window_bounds = array<i64: 1, 128>}, {pipeline_mode = #tpu.pipeline_mode<synchronous>, transform_indices = @transform_3, window_bounds = array<i64: 128, 128>}, {pipeline_mode = #tpu.pipeline_mode<synchronous>, transform_indices = @transform_4, window_bounds = array<i64: 1, 128>}, {pipeline_mode = #tpu.pipeline_mode<synchronous>, transform_indices = @transform_5, window_bounds = array<i64: 128, 128>}, {pipeline_mode = #tpu.pipeline_mode<synchronous>, transform_indices = @transform_6, window_bounds = array<i64: 1, 128>}, {transform_indices = @transform_7, window_bounds = array<i64: 8, 128>}]} {
    %c0 = arith.constant 0 : index
    %c0_0 = arith.constant 0 : index
    %0 = vector.load %arg1[%c0, %c0_0] : memref<8x32xbf16, #tpu.memory_space<vmem>>, vector<8x32xbf16>
    %c0_1 = arith.constant 0 : index
    %c0_2 = arith.constant 0 : index
    %1 = vector.load %arg2[%c0_1, %c0_2] : memref<32x128xbf16, #tpu.memory_space<vmem>>, vector<32x128xbf16>
    %c0_3 = arith.constant 0 : index
    %c0_4 = arith.constant 0 : index
    %2 = vector.load %arg3[%c0_3, %c0_4] : memref<1x128xf32, #tpu.memory_space<vmem>>, vector<1x128xf32>
    %cst = arith.constant dense<0.000000e+00> : vector<8x128xf32>
    %3 = tpu.matmul %0, %1, %cst {dimension_numbers = #tpu.dot_dimension_numbers<[1], [0], [0], [1], [0, 0, 1, 1], [], []>} : vector<8x32xbf16>, vector<32x128xbf16>, vector<8x128xf32> -> vector<8x128xf32>
    %4 = vector.broadcast %2 : vector<1x128xf32> to vector<8x128xf32>
    %5 = arith.addf %3, %4 : vector<8x128xf32>
    %6 = arith.truncf %5 : vector<8x128xf32> to vector<8x128xbf16>
    %7 = math.tanh %6 : vector<8x128xbf16>
    %c0_5 = arith.constant 0 : index
    %c0_6 = arith.constant 0 : index
    %8 = vector.load %arg4[%c0_5, %c0_6] : memref<128x128xbf16, #tpu.memory_space<vmem>>, vector<128x128xbf16>
    %c0_7 = arith.constant 0 : index
    %c0_8 = arith.constant 0 : index
    %9 = vector.load %arg5[%c0_7, %c0_8] : memref<1x128xf32, #tpu.memory_space<vmem>>, vector<1x128xf32>
    %cst_9 = arith.constant dense<0.000000e+00> : vector<8x128xf32>
    %10 = tpu.matmul %7, %8, %cst_9 {dimension_numbers = #tpu.dot_dimension_numbers<[1], [0], [0], [1], [0, 0, 1, 1], [], []>} : vector<8x128xbf16>, vector<128x128xbf16>, vector<8x128xf32> -> vector<8x128xf32>
    %11 = vector.broadcast %9 : vector<1x128xf32> to vector<8x128xf32>
    %12 = arith.addf %10, %11 : vector<8x128xf32>
    %13 = arith.truncf %12 : vector<8x128xf32> to vector<8x128xbf16>
    %14 = math.tanh %13 : vector<8x128xbf16>
    %c0_10 = arith.constant 0 : index
    %c0_11 = arith.constant 0 : index
    %15 = vector.load %arg6[%c0_10, %c0_11] : memref<128x128xbf16, #tpu.memory_space<vmem>>, vector<128x128xbf16>
    %c0_12 = arith.constant 0 : index
    %c0_13 = arith.constant 0 : index
    %16 = vector.load %arg7[%c0_12, %c0_13] : memref<1x128xf32, #tpu.memory_space<vmem>>, vector<1x128xf32>
    %cst_14 = arith.constant dense<0.000000e+00> : vector<8x128xf32>
    %17 = tpu.matmul %14, %15, %cst_14 {dimension_numbers = #tpu.dot_dimension_numbers<[1], [0], [0], [1], [0, 0, 1, 1], [], []>} : vector<8x128xbf16>, vector<128x128xbf16>, vector<8x128xf32> -> vector<8x128xf32>
    %18 = vector.broadcast %16 : vector<1x128xf32> to vector<8x128xf32>
    %19 = arith.addf %17, %18 : vector<8x128xf32>
    %20 = arith.truncf %19 : vector<8x128xf32> to vector<8x128xbf16>
    %c0_15 = arith.constant 0 : index
    %c0_16 = arith.constant 0 : index
    %21 = vector.load %arg8[%c0_15, %c0_16] : memref<8x128xbf16, #tpu.memory_space<vmem>>, vector<8x128xbf16>
    tpu.vector_store %arg8[%c0_15, %c0_16], %20 {strides = array<i32>} : memref<8x128xbf16, #tpu.memory_space<vmem>>, vector<8x128xbf16>,
    return
  }
  func.func @transform_0(%arg0: i32) -> (i32, i32) {
    %c0_i32 = arith.constant 0 : i32
    %c0_i32_0 = arith.constant 0 : i32
    return %arg0, %c0_i32 : i32, i32
  }
  func.func @transform_1(%arg0: i32) -> (i32, i32) {
    %c0_i32 = arith.constant 0 : i32
    %c0_i32_0 = arith.constant 0 : i32
    %c0_i32_1 = arith.constant 0 : i32
    return %c0_i32, %c0_i32_0 : i32, i32
  }
  func.func @transform_2(%arg0: i32) -> (i32, i32) {
    %c0_i32 = arith.constant 0 : i32
    %c0_i32_0 = arith.constant 0 : i32
    %c0_i32_1 = arith.constant 0 : i32
    return %c0_i32, %c0_i32_0 : i32, i32
  }
  func.func @transform_3(%arg0: i32) -> (i32, i32) {
    %c0_i32 = arith.constant 0 : i32
    %c0_i32_0 = arith.constant 0 : i32
    %c0_i32_1 = arith.constant 0 : i32
    return %c0_i32, %c0_i32_0 : i32, i32
  }
  func.func @transform_4(%arg0: i32) -> (i32, i32) {
    %c0_i32 = arith.constant 0 : i32
    %c0_i32_0 = arith.constant 0 : i32
    %c0_i32_1 = arith.constant 0 : i32
    return %c0_i32, %c0_i32_0 : i32, i32
  }
  func.func @transform_5(%arg0: i32) -> (i32, i32) {
    %c0_i32 = arith.constant 0 : i32
    %c0_i32_0 = arith.constant 0 : i32
    %c0_i32_1 = arith.constant 0 : i32
    return %c0_i32, %c0_i32_0 : i32, i32
  }
  func.func @transform_6(%arg0: i32) -> (i32, i32) {
    %c0_i32 = arith.constant 0 : i32
    %c0_i32_0 = arith.constant 0 : i32
    %c0_i32_1 = arith.constant 0 : i32
    return %c0_i32, %c0_i32_0 : i32, i32
  }
  func.func @transform_7(%arg0: i32) -> (i32, i32) {
    %c0_i32 = arith.constant 0 : i32
    %c0_i32_0 = arith.constant 0 : i32
    return %arg0, %c0_i32 : i32, i32
  }
}

module attributes {stable_mosaic.version = 11 : i64} {
  func.func @_mlp_kernel(%arg0: i32, %arg1: memref<8x32xbf16, #tpu.memory_space<vmem>>, %arg2: memref<32x128xbf16, #tpu.memory_space<vmem>>, %arg3: memref<1x128xf32, #tpu.memory_space<vmem>>, %arg4: memref<128x128xbf16, #tpu.memory_space<vmem>>, %arg5: memref<1x128xf32, #tpu.memory_space<vmem>>, %arg6: memref<128x128xbf16, #tpu.memory_space<vmem>>, %arg7: memref<1x128xf32, #tpu.memory_space<vmem>>, %arg8: memref<8x128xbf16, #tpu.memory_space<vmem>>) attributes {dimension_semantics = [#tpu.dimension_semantics<parallel>], iteration_bounds = array<i64: 1>, scalar_prefetch = 0 : i64, scratch_operands = 0 : i64, tpu.core_type = #tpu.core_type<tc>, window_params = [{transform_indices = @transform_0, window_bounds = array<i64: 8, 32>}, {pipeline_mode = #tpu.pipeline_mode<synchronous>, transform_indices = @transform_1, window_bounds = array<i64: 32, 128>}, {pipeline_mode = #tpu.pipeline_mode<synchronous>, transform_indices = @transform_2, window_bounds = array<i64: 1, 128>}, {pipeline_mode = #tpu.pipeline_mode<synchronous>, transform_indices = @transform_3, window_bounds = array<i64: 128, 128>}, {pipeline_mode = #tpu.pipeline_mode<synchronous>, transform_indices = @transform_4, window_bounds = array<i64: 1, 128>}, {pipeline_mode = #tpu.pipeline_mode<synchronous>, transform_indices = @transform_5, window_bounds = array<i64: 128, 128>}, {pipeline_mode = #tpu.pipeline_mode<synchronous>, transform_indices = @transform_6, window_bounds = array<i64: 1, 128>}, {transform_indices = @transform_7, window_bounds = array<i64: 8, 128>}]} {
    %c0 = arith.constant 0 : index
    %c0_0 = arith.constant 0 : index
    %0 = vector.load %arg1[%c0, %c0_0] : memref<8x32xbf16, #tpu.memory_space<vmem>>, vector<8x32xbf16>
    %c0_1 = arith.constant 0 : index
    %c0_2 = arith.constant 0 : index
    %1 = vector.load %arg2[%c0_1, %c0_2] : memref<32x128xbf16, #tpu.memory_space<vmem>>, vector<32x128xbf16>
    %c0_3 = arith.constant 0 : index
    %c0_4 = arith.constant 0 : index
    %2 = vector.load %arg3[%c0_3, %c0_4] : memref<1x128xf32, #tpu.memory_space<vmem>>, vector<1x128xf32>
    %cst = arith.constant dense<0.000000e+00> : vector<8x128xf32>
    %3 = tpu.matmul %0, %1, %cst {dimension_numbers = #tpu.dot_dimension_numbers<[1], [0], [0], [1], [0, 0, 1, 1], [], []>} : vector<8x32xbf16>, vector<32x128xbf16>, vector<8x128xf32> -> vector<8x128xf32>
    %4 = vector.broadcast %2 : vector<1x128xf32> to vector<8x128xf32>
    %5 = arith.addf %3, %4 : vector<8x128xf32>
    %6 = arith.truncf %5 : vector<8x128xf32> to vector<8x128xbf16>
    %7 = math.tanh %6 : vector<8x128xbf16>
    %c0_5 = arith.constant 0 : index
    %c0_6 = arith.constant 0 : index
    %8 = vector.load %arg4[%c0_5, %c0_6] : memref<128x128xbf16, #tpu.memory_space<vmem>>, vector<128x128xbf16>
    %c0_7 = arith.constant 0 : index
    %c0_8 = arith.constant 0 : index
    %9 = vector.load %arg5[%c0_7, %c0_8] : memref<1x128xf32, #tpu.memory_space<vmem>>, vector<1x128xf32>
    %cst_9 = arith.constant dense<0.000000e+00> : vector<8x128xf32>
    %10 = tpu.matmul %7, %8, %cst_9 {dimension_numbers = #tpu.dot_dimension_numbers<[1], [0], [0], [1], [0, 0, 1, 1], [], []>} : vector<8x128xbf16>, vector<128x128xbf16>, vector<8x128xf32> -> vector<8x128xf32>
    %11 = vector.broadcast %9 : vector<1x128xf32> to vector<8x128xf32>
    %12 = arith.addf %10, %11 : vector<8x128xf32>
    %13 = arith.truncf %12 : vector<8x128xf32> to vector<8x128xbf16>
    %14 = math.tanh %13 : vector<8x128xbf16>
    %c0_10 = arith.constant 0 : index
    %c0_11 = arith.constant 0 : index
    %15 = vector.load %arg6[%c0_10, %c0_11] : memref<128x128xbf16, #tpu.memory_space<vmem>>, vector<128x128xbf16>
    %c0_12 = arith.constant 0 : index
    %c0_13 = arith.constant 0 : index
    %16 = vector.load %arg7[%c0_12, %c0_13] : memref<1x128xf32, #tpu.memory_space<vmem>>, vector<1x128xf32>
    %cst_14 = arith.constant dense<0.000000e+00> : vector<8x128xf32>
    %17 = tpu.matmul %14, %15, %cst_14 {dimension_numbers = #tpu.dot_dimension_numbers<[1], [0], [0], [1], [0, 0, 1, 1], [], []>} : vector<8x128xbf16>, vector<128x128xbf16>, vector<8x128xf32> -> vector<8x128xf32>
    %18 = vector.broadcast %16 : vector<1x128xf32> to vector<8x128xf32>
    %19 = arith.addf %17, %18 : vector<8x128xf32>
    %20 = arith.truncf %19 : vector<8x128xf32> to vector<8x128xbf16>
    %c0_15 = arith.constant 0 : index
    %c0_16 = arith.constant 0 : index
    %21 = vector.load %arg8[%c0_15, %c0_16] : memref<8x128xbf16, #tpu.memory_space<vmem>>, vector<8x128xbf16>
    tpu.vector_store %arg8[%c0_15, %c0_16], %20 {strides = array<i32>} : memref<8x128xbf16, #tpu.memory_space<vmem>>, vector<8x128xbf16>,
    return
  }
  func.func @transform_0(%arg0: i32) -> (i32, i32) {
    %c0_i32 = arith.constant 0 : i32
    %c0_i32_0 = arith.constant 0 : i32
    return %arg0, %c0_i32 : i32, i32
  }
  func.func @transform_1(%arg0: i32) -> (i32, i32) {
    %c0_i32 = arith.constant 0 : i32
    %c0_i32_0 = arith.constant 0 : i32
    %c0_i32_1 = arith.constant 0 : i32
    return %c0_i32, %c0_i32_0 : i32, i32
  }
  func.func @transform_2(%arg0: i32) -> (i32, i32) {
    %c0_i32 = arith.constant 0 : i32
    %c0_i32_0 = arith.constant 0 : i32
    %c0_i32_1 = arith.constant 0 : i32
    return %c0_i32, %c0_i32_0 : i32, i32
  }
  func.func @transform_3(%arg0: i32) -> (i32, i32) {
    %c0_i32 = arith.constant 0 : i32
    %c0_i32_0 = arith.constant 0 : i32
    %c0_i32_1 = arith.constant 0 : i32
    return %c0_i32, %c0_i32_0 : i32, i32
  }
  func.func @transform_4(%arg0: i32) -> (i32, i32) {
    %c0_i32 = arith.constant 0 : i32
    %c0_i32_0 = arith.constant 0 : i32
    %c0_i32_1 = arith.constant 0 : i32
    return %c0_i32, %c0_i32_0 : i32, i32
  }
  func.func @transform_5(%arg0: i32) -> (i32, i32) {
    %c0_i32 = arith.constant 0 : i32
    %c0_i32_0 = arith.constant 0 : i32
    %c0_i32_1 = arith.constant 0 : i32
    return %c0_i32, %c0_i32_0 : i32, i32
  }
  func.func @transform_6(%arg0: i32) -> (i32, i32) {
    %c0_i32 = arith.constant 0 : i32
    %c0_i32_0 = arith.constant 0 : i32
    %c0_i32_1 = arith.constant 0 : i32
    return %c0_i32, %c0_i32_0 : i32, i32
  }
  func.func @transform_7(%arg0: i32) -> (i32, i32) {
    %c0_i32 = arith.constant 0 : i32
    %c0_i32_0 = arith.constant 0 : i32
    return %arg0, %c0_i32 : i32, i32
  }
}

</mosaic_0001>

<llo_original>
// kernel: tpu_custom_call.1
$region0: #{tpu_custom_call.1}
  #allocation0 [shape = 'u32[]', space=smem, size = 0x4, offset = 0x4, fixed_abs, tag = 'smem constant byte address 0x4 - core index']
  #allocation1 [shape = 'u32[144,128]{1,0:T(1,128)}', space=vmem, size = 0x12000, scoped, tag = 'internal scratch']
  %s0 = inlined_call_operand.hbm [shape: bf16[8,32], index: 0, kind: input, shape index: {}]
  %s1 = inlined_call_operand.hbm [shape: bf16[32,128], index: 1, kind: input, shape index: {}]
  %s2 = inlined_call_operand.vmem [shape: f32[1,128], index: 2, kind: input, shape index: {}]
  %s3 = inlined_call_operand.hbm [shape: bf16[128,128], index: 3, kind: input, shape index: {}]
  %s4 = inlined_call_operand.vmem [shape: f32[1,128], index: 4, kind: input, shape index: {}]
  %s5 = inlined_call_operand.hbm [shape: bf16[128,128], index: 5, kind: input, shape index: {}]
  %s6 = inlined_call_operand.vmem [shape: f32[1,128], index: 6, kind: input, shape index: {}]
  %s7 = inlined_call_operand.hbm [shape: bf16[8,128], index: 7, kind: output, shape index: {}]
  %s8 = sld [smem:[#allocation0]]
  $region54: #{tpu_custom_call.1} parent=0
    _
  %s10 = ssub.s32 1, %s8
  %s11 = scalar_select 0, %s10, %s8
  $region1: #{tpu_custom_call.1} parent=0
    #allocation2 [shape = 'u8[2048]{0}', space=vmem, size = 0x800, scoped, tag = 'input window, operand 0, single buffered']
    #allocation3 [shape = 's32[1]{0}', space=sflag, size = 0x4, scoped, tag = 'scoped memory for tpu_custom_call.1']
    #allocation4 [shape = 's32[1]{0}', space=sflag, size = 0x4, scoped, tag = 'scoped memory for tpu_custom_call.1']
    #allocation5 [shape = 'u8[8192]{0}', space=vmem, size = 0x2000, scoped, tag = 'input window, operand 1, single buffered']
    #allocation6 [shape = 's32[1]{0}', space=sflag, size = 0x4, scoped, tag = 'scoped memory for tpu_custom_call.1']
    #allocation7 [shape = 'u8[32768]{0}', space=vmem, size = 0x8000, scoped, tag = 'input window, operand 3, single buffered']
    #allocation8 [shape = 'u8[32768]{0}', space=vmem, size = 0x8000, scoped, tag = 'input window, operand 5, single buffered']
    #allocation9 [shape = 's32[1]{0}', space=sflag, size = 0x4, scoped, tag = 'scoped memory for tpu_custom_call.1']
    #allocation10 [shape = 'u8[2048]{0}', space=vmem, size = 0x800, scoped, tag = 'output window, operand 0, single buffered']
    %12 = vsyncpa [#allocation3], 0
    %13 = vsyncpa [#allocation6], 0
    %14 = vsyncpa [#allocation9], 0
    %15 = vsyncpa [#allocation4], 0
    // Predicated region
    $region2: #{tpu_custom_call.1} parent=1 // pred_check
      _
    $region3: #{tpu_custom_call.1} parent=1 // pred_check_branch
      %17 = sbr.rel (0) target = $region5
    $region4: #{tpu_custom_call.1} parent=1 // pred_region
      %s19 = ssub.s32 64, 64
      %20 = vsyncadd [#allocation3], %s19
      %s22 = sshll.u32 [#allocation2], 4
      %s23 = int_to_ptr.vmem [resolvable:$true] %s22
      %25 = dma.hbm_to_vmem [thread:$0]  %s0, 64, %s23, [#allocation3]
    $region5: #{tpu_custom_call.1} parent=1 // pred_fallthru
      _
    // Predicated region
    $region6: #{tpu_custom_call.1} parent=1 // pred_check
      _
    $region7: #{tpu_custom_call.1} parent=1 // pred_check_branch
      %27 = sbr.rel (0) target = $region9
    $region8: #{tpu_custom_call.1} parent=1 // pred_region
      %s29 = ssub.s32 256, 256
      %30 = vsyncadd [#allocation6], %s29
      %s31 = sshll.u32 [#allocation5], 4
      %s32 = int_to_ptr.vmem [resolvable:$true] %s31
      %37 = dma.hbm_to_vmem [thread:$0]  %s1, 256, %s32, [#allocation6], 64, 64, 4
    $region9: #{tpu_custom_call.1} parent=1 // pred_fallthru
      _
    // Predicated region
    $region10: #{tpu_custom_call.1} parent=1 // pred_check
      _
    $region11: #{tpu_custom_call.1} parent=1 // pred_check_branch
      %39 = sbr.rel (0) target = $region13
    $region12: #{tpu_custom_call.1} parent=1 // pred_region
      _
    $region13: #{tpu_custom_call.1} parent=1 // pred_fallthru
      _
    // Predicated region
    $region14: #{tpu_custom_call.1} parent=1 // pred_check
      _
    $region15: #{tpu_custom_call.1} parent=1 // pred_check_branch
      %41 = sbr.rel (0) target = $region17
    $region16: #{tpu_custom_call.1} parent=1 // pred_region
      %s43 = ssub.s32 1024, 1024
      %44 = vsyncadd [#allocation6], %s43
      %s45 = sshll.u32 [#allocation7], 4
      %s46 = int_to_ptr.vmem [resolvable:$true] %s45
      %51 = dma.hbm_to_vmem [thread:$0]  %s3, 1024, %s46, [#allocation6], 64, 64, 4
    $region17: #{tpu_custom_call.1} parent=1 // pred_fallthru
      _
    // Predicated region
    $region18: #{tpu_custom_call.1} parent=1 // pred_check
      _
    $region19: #{tpu_custom_call.1} parent=1 // pred_check_branch
      %53 = sbr.rel (0) target = $region21
    $region20: #{tpu_custom_call.1} parent=1 // pred_region
      _
    $region21: #{tpu_custom_call.1} parent=1 // pred_fallthru
      _
    // Predicated region
    $region22: #{tpu_custom_call.1} parent=1 // pred_check
      _
    $region23: #{tpu_custom_call.1} parent=1 // pred_check_branch
      %55 = sbr.rel (0) target = $region25
    $region24: #{tpu_custom_call.1} parent=1 // pred_region
      %s57 = ssub.s32 1024, 1024
      %58 = vsyncadd [#allocation9], %s57
      %s59 = sshll.u32 [#allocation8], 4
      %s60 = int_to_ptr.vmem [resolvable:$true] %s59
      %65 = dma.hbm_to_vmem [thread:$0]  %s5, 1024, %s60, [#allocation9], 64, 64, 4
    $region25: #{tpu_custom_call.1} parent=1 // pred_fallthru
      _
    // Predicated region
    $region26: #{tpu_custom_call.1} parent=1 // pred_check
      _
    $region27: #{tpu_custom_call.1} parent=1 // pred_check_branch
      %67 = sbr.rel (0) target = $region29
    $region28: #{tpu_custom_call.1} parent=1 // pred_region
      _
    $region29: #{tpu_custom_call.1} parent=1 // pred_fallthru
      _
    // Predicated region
    $region30: #{tpu_custom_call.1} parent=1 // pred_check
      _
    $region31: #{tpu_custom_call.1} parent=1 // pred_check_branch
      %69 = sbr.rel (0) target = $region33
    $region32: #{tpu_custom_call.1} parent=1 // pred_region
      %70 = dma.done [#allocation3], 64
    $region33: #{tpu_custom_call.1} parent=1 // pred_fallthru
      _
    // Predicated region
    $region34: #{tpu_custom_call.1} parent=1 // pred_check
      _
    $region35: #{tpu_custom_call.1} parent=1 // pred_check_branch
      %72 = sbr.rel (0) target = $region37
    $region36: #{tpu_custom_call.1} parent=1 // pred_region
      %73 = dma.done [#allocation6], 256
    $region37: #{tpu_custom_call.1} parent=1 // pred_fallthru
      _
    // Predicated region
    $region38: #{tpu_custom_call.1} parent=1 // pred_check
      _
    $region39: #{tpu_custom_call.1} parent=1 // pred_check_branch
      %75 = sbr.rel (0) target = $region41
    $region40: #{tpu_custom_call.1} parent=1 // pred_region
      %76 = dma.done [#allocation6], 1024
    $region41: #{tpu_custom_call.1} parent=1 // pred_fallthru
      _
    // Predicated region
    $region42: #{tpu_custom_call.1} parent=1 // pred_check
      _
    $region43: #{tpu_custom_call.1} parent=1 // pred_check_branch
      %78 = sbr.rel (0) target = $region45
    $region44: #{tpu_custom_call.1} parent=1 // pred_region
      %79 = dma.done [#allocation9], 1024
    $region45: #{tpu_custom_call.1} parent=1 // pred_fallthru
      _
    %v81 = vld [vmem:[#allocation2] sm:$0xf]
    %v82 = vld [vmem:[#allocation5] sm:$0xf]
    %v83 = vld [vmem:[#allocation5 + $0x4] sm:$0xf]
    %v84 = vld [vmem:[#allocation5 + $0x8] sm:$0xf]
    %v85 = vld [vmem:[#allocation5 + $0xc] sm:$0xf]
    %v86 = vld [vmem:[%s2] sm:$0x1]
    %v88 = vlaneseq
    %v89 = vshrl.u32 %v88, 7
    %v90 = vsub.s32 0, %v89
    %v91 = vrot.slane %v86, %v90
    %v97 = vunpack.c.l.b16 %v82
    %v98 = vunpack.c.l.b16 %v83
    %v99 = vunpack.c.l.b16 %v84
    %v100 = vunpack.c.l.b16 %v85
    %v101 = vpack.c.b16 %v98, %v97
    %v102 = vpack.c.b16 %v100, %v99
    %vm105 = vcmask 261120
    %v107 = vsel %vm105, %v81, 0
    %109 = vmatprep.subr.bf16.mxu0 0
    %110 = vmatpush1.bf16.msra.mxu0 %v101
    %111 = vmatprep.subr.bf16.mxu0 0
    %112 = vmatpush1.bf16.msra.mxu0 %v102
    %113 = vmatprep.subr.bf16.mxu0 0
    %114 = vmatpush1.bf16.msra.mxu0 0
    %115 = vmatprep.subr.bf16.mxu0 0
    %116 = vmatpush1.bf16.msra.mxu0 0
    %117 = vmatprep.subr.bf16.mxu0 0
    %118 = vmatpush1.bf16.msra.mxu0 0
    %119 = vmatprep.subr.bf16.mxu0 0
    %120 = vmatpush1.bf16.msra.mxu0 0
    %121 = vmatprep.subr.bf16.mxu0 0
    %122 = vmatpush1.bf16.msra.mxu0 0
    %123 = vmatprep.subr.bf16.mxu0 0
    %124 = vmatpush1.bf16.msra.mxu0 0
    %125 = vmatprep.subr.bf16.mxu0 0
    %126 = vmatpush1.bf16.msra.mxu0 0
    %127 = vmatprep.subr.bf16.mxu0 0
    %128 = vmatpush1.bf16.msra.mxu0 0
    %129 = vmatprep.subr.bf16.mxu0 0
    %130 = vmatpush1.bf16.msra.mxu0 0
    %131 = vmatprep.subr.bf16.mxu0 0
    %132 = vmatpush1.bf16.msra.mxu0 0
    %133 = vmatprep.subr.bf16.mxu0 0
    %134 = vmatpush1.bf16.msra.mxu0 0
    %135 = vmatprep.subr.bf16.mxu0 0
    %136 = vmatpush1.bf16.msra.mxu0 0
    %137 = vmatprep.subr.bf16.mxu0 0
    %138 = vmatpush1.bf16.msra.mxu0 0
    %139 = vmatprep.subr.bf16.mxu0 0
    %140 = vmatpush1.bf16.msra.mxu0 0
    %141 = vmatprep.mubr.bf16.mxu0 0
    %142 = vmatmul.mubr.bf16.gmra.mrb[0].mxu0 %v107
    %v143 = vpop.f32.mrb[0].mxu0
    %v144 = vadd.f32 %v91, %v143
    %v145 = vpop.f32.mrb[0].mxu0
    %v146 = vpop.f32.mrb[0].mxu0
    %v147 = vpop.f32.mrb[0].mxu0
    %148 = vdwg.mxu0
    %v149 = vpack.c.bf16 %v144, %v144
    %v150 = vtanh.bf16.pop %v149
    %v151 = vld [vmem:[#allocation7] sm:$0xf]
    %v152 = vld [vmem:[#allocation7 + $0x4] sm:$0xf]
    %v153 = vld [vmem:[#allocation7 + $0x8] sm:$0xf]
    %v154 = vld [vmem:[#allocation7 + $0xc] sm:$0xf]
    %v155 = vld [vmem:[#allocation7 + $0x10] sm:$0xf]
    %v156 = vld [vmem:[#allocation7 + $0x14] sm:$0xf]
    %v157 = vld [vmem:[#allocation7 + $0x18] sm:$0xf]
    %v158 = vld [vmem:[#allocation7 + $0x1c] sm:$0xf]
    %v159 = vld [vmem:[#allocation7 + $0x20] sm:$0xf]
    %v160 = vld [vmem:[#allocation7 + $0x24] sm:$0xf]
    %v161 = vld [vmem:[#allocation7 + $0x28] sm:$0xf]
    %v162 = vld [vmem:[#allocation7 + $0x2c] sm:$0xf]
    %v163 = vld [vmem:[#allocation7 + $0x30] sm:$0xf]
    %v164 = vld [vmem:[#allocation7 + $0x34] sm:$0xf]
    %v165 = vld [vmem:[#allocation7 + $0x38] sm:$0xf]
    %v166 = vld [vmem:[#allocation7 + $0x3c] sm:$0xf]
    %v167 = vld [vmem:[%s4] sm:$0x1]
    %v169 = vlaneseq
    %v170 = vshrl.u32 %v169, 7
    %v171 = vsub.s32 0, %v170
    %v172 = vrot.slane %v167, %v171
    %v190 = vunpack.c.l.b16 %v151
    %v191 = vunpack.c.l.b16 %v152
    %v192 = vunpack.c.l.b16 %v153
    %v193 = vunpack.c.l.b16 %v154
    %v194 = vunpack.c.l.b16 %v155
    %v195 = vunpack.c.l.b16 %v156
    %v196 = vunpack.c.l.b16 %v157
    %v197 = vunpack.c.l.b16 %v158
    %v198 = vunpack.c.l.b16 %v159
    %v199 = vunpack.c.l.b16 %v160
    %v200 = vunpack.c.l.b16 %v161
    %v201 = vunpack.c.l.b16 %v162
    %v202 = vunpack.c.l.b16 %v163
    %v203 = vunpack.c.l.b16 %v164
    %v204 = vunpack.c.l.b16 %v165
    %v205 = vunpack.c.l.b16 %v166
    %v206 = vpack.c.b16 %v191, %v190
    %v207 = vpack.c.b16 %v193, %v192
    %v208 = vpack.c.b16 %v195, %v194
    %v209 = vpack.c.b16 %v197, %v196
    %v210 = vpack.c.b16 %v199, %v198
    %v211 = vpack.c.b16 %v201, %v200
    %v212 = vpack.c.b16 %v203, %v202
    %v213 = vpack.c.b16 %v205, %v204
    %222 = vmatprep.subr.bf16.mxu0 0
    %223 = vmatpush1.bf16.msra.mxu0 %v206
    %224 = vmatprep.subr.bf16.mxu0 0
    %225 = vmatpush1.bf16.msra.mxu0 %v207
    %226 = vmatprep.subr.bf16.mxu0 0
    %227 = vmatpush1.bf16.msra.mxu0 %v208
    %228 = vmatprep.subr.bf16.mxu0 0
    %229 = vmatpush1.bf16.msra.mxu0 %v209
    %230 = vmatprep.subr.bf16.mxu0 0
    %231 = vmatpush1.bf16.msra.mxu0 %v210
    %232 = vmatprep.subr.bf16.mxu0 0
    %233 = vmatpush1.bf16.msra.mxu0 %v211
    %234 = vmatprep.subr.bf16.mxu0 0
    %235 = vmatpush1.bf16.msra.mxu0 %v212
    %236 = vmatprep.subr.bf16.mxu0 0
    %237 = vmatpush1.bf16.msra.mxu0 %v213
    %238 = vmatprep.subr.bf16.mxu0 0
    %239 = vmatpush1.bf16.msra.mxu0 0
    %240 = vmatprep.subr.bf16.mxu0 0
    %241 = vmatpush1.bf16.msra.mxu0 0
    %242 = vmatprep.subr.bf16.mxu0 0
    %243 = vmatpush1.bf16.msra.mxu0 0
    %244 = vmatprep.subr.bf16.mxu0 0
    %245 = vmatpush1.bf16.msra.mxu0 0
    %246 = vmatprep.subr.bf16.mxu0 0
    %247 = vmatpush1.bf16.msra.mxu0 0
    %248 = vmatprep.subr.bf16.mxu0 0
    %249 = vmatpush1.bf16.msra.mxu0 0
    %250 = vmatprep.subr.bf16.mxu0 0
    %251 = vmatpush1.bf16.msra.mxu0 0
    %252 = vmatprep.subr.bf16.mxu0 0
    %253 = vmatpush1.bf16.msra.mxu0 0
    %254 = vmatprep.mubr.bf16.mxu0 0
    %255 = vmatmul.mubr.bf16.gmra.mrb[0].mxu0 %v150
    %v256 = vpop.f32.mrb[0].mxu0
    %v257 = vadd.f32 %v172, %v256
    %v258 = vpop.f32.mrb[0].mxu0
    %v259 = vpop.f32.mrb[0].mxu0
    %v260 = vpop.f32.mrb[0].mxu0
    %261 = vdwg.mxu0
    %v262 = vpack.c.bf16 %v257, %v257
    %v263 = vtanh.bf16.pop %v262
    %v264 = vld [vmem:[#allocation8] sm:$0xf]
    %v265 = vld [vmem:[#allocation8 + $0x4] sm:$0xf]
    %v266 = vld [vmem:[#allocation8 + $0x8] sm:$0xf]
    %v267 = vld [vmem:[#allocation8 + $0xc] sm:$0xf]
    %v268 = vld [vmem:[#allocation8 + $0x10] sm:$0xf]
    %v269 = vld [vmem:[#allocation8 + $0x14] sm:$0xf]
    %v270 = vld [vmem:[#allocation8 + $0x18] sm:$0xf]
    %v271 = vld [vmem:[#allocation8 + $0x1c] sm:$0xf]
    %v272 = vld [vmem:[#allocation8 + $0x20] sm:$0xf]
    %v273 = vld [vmem:[#allocation8 + $0x24] sm:$0xf]
    %v274 = vld [vmem:[#allocation8 + $0x28] sm:$0xf]
    %v275 = vld [vmem:[#allocation8 + $0x2c] sm:$0xf]
    %v276 = vld [vmem:[#allocation8 + $0x30] sm:$0xf]
    %v277 = vld [vmem:[#allocation8 + $0x34] sm:$0xf]
    %v278 = vld [vmem:[#allocation8 + $0x38] sm:$0xf]
    %v279 = vld [vmem:[#allocation8 + $0x3c] sm:$0xf]
    %v280 = vld [vmem:[%s6] sm:$0x1]
    %v282 = vlaneseq
    %v283 = vshrl.u32 %v282, 7
    %v284 = vsub.s32 0, %v283
    %v285 = vrot.slane %v280, %v284
    %v303 = vunpack.c.l.b16 %v264
    %v304 = vunpack.c.l.b16 %v265
    %v305 = vunpack.c.l.b16 %v266
    %v306 = vunpack.c.l.b16 %v267
    %v307 = vunpack.c.l.b16 %v268
    %v308 = vunpack.c.l.b16 %v269
    %v309 = vunpack.c.l.b16 %v270
    %v310 = vunpack.c.l.b16 %v271
    %v311 = vunpack.c.l.b16 %v272
    %v312 = vunpack.c.l.b16 %v273
    %v313 = vunpack.c.l.b16 %v274
    %v314 = vunpack.c.l.b16 %v275
    %v315 = vunpack.c.l.b16 %v276
    %v316 = vunpack.c.l.b16 %v277
    %v317 = vunpack.c.l.b16 %v278
    %v318 = vunpack.c.l.b16 %v279
    %v319 = vpack.c.b16 %v304, %v303
    %v320 = vpack.c.b16 %v306, %v305
    %v321 = vpack.c.b16 %v308, %v307
    %v322 = vpack.c.b16 %v310, %v309
    %v323 = vpack.c.b16 %v312, %v311
    %v324 = vpack.c.b16 %v314, %v313
    %v325 = vpack.c.b16 %v316, %v315
    %v326 = vpack.c.b16 %v318, %v317
    %335 = vmatprep.subr.bf16.mxu0 0
    %336 = vmatpush1.bf16.msra.mxu0 %v319
    %337 = vmatprep.subr.bf16.mxu0 0
    %338 = vmatpush1.bf16.msra.mxu0 %v320
    %339 = vmatprep.subr.bf16.mxu0 0
    %340 = vmatpush1.bf16.msra.mxu0 %v321
    %341 = vmatprep.subr.bf16.mxu0 0
    %342 = vmatpush1.bf16.msra.mxu0 %v322
    %343 = vmatprep.subr.bf16.mxu0 0
    %344 = vmatpush1.bf16.msra.mxu0 %v323
    %345 = vmatprep.subr.bf16.mxu0 0
    %346 = vmatpush1.bf16.msra.mxu0 %v324
    %347 = vmatprep.subr.bf16.mxu0 0
    %348 = vmatpush1.bf16.msra.mxu0 %v325
    %349 = vmatprep.subr.bf16.mxu0 0
    %350 = vmatpush1.bf16.msra.mxu0 %v326
    %351 = vmatprep.subr.bf16.mxu0 0
    %352 = vmatpush1.bf16.msra.mxu0 0
    %353 = vmatprep.subr.bf16.mxu0 0
    %354 = vmatpush1.bf16.msra.mxu0 0
    %355 = vmatprep.subr.bf16.mxu0 0
    %356 = vmatpush1.bf16.msra.mxu0 0
    %357 = vmatprep.subr.bf16.mxu0 0
    %358 = vmatpush1.bf16.msra.mxu0 0
    %359 = vmatprep.subr.bf16.mxu0 0
    %360 = vmatpush1.bf16.msra.mxu0 0
    %361 = vmatprep.subr.bf16.mxu0 0
    %362 = vmatpush1.bf16.msra.mxu0 0
    %363 = vmatprep.subr.bf16.mxu0 0
    %364 = vmatpush1.bf16.msra.mxu0 0
    %365 = vmatprep.subr.bf16.mxu0 0
    %366 = vmatpush1.bf16.msra.mxu0 0
    %367 = vmatprep.mubr.bf16.mxu0 0
    %368 = vmatmul.mubr.bf16.gmra.mrb[0].mxu0 %v263
    %v369 = vpop.f32.mrb[0].mxu0
    %v370 = vadd.f32 %v285, %v369
    %v371 = vpop.f32.mrb[0].mxu0
    %v372 = vpop.f32.mrb[0].mxu0
    %v373 = vpop.f32.mrb[0].mxu0
    %374 = vdwg.mxu0
    %v375 = vpack.c.bf16 %v370, %v370
    %376 = vst [vmem:[#allocation10] sm:$0xf] %v375
    // Predicated region
    $region46: #{tpu_custom_call.1} parent=1 // pred_check
      _
    $region47: #{tpu_custom_call.1} parent=1 // pred_check_branch
      %378 = sbr.rel (0) target = $region49
    $region48: #{tpu_custom_call.1} parent=1 // pred_region
      %s380 = ssub.s32 64, 64
      %381 = vsyncadd [#allocation4], %s380
      %s383 = sshll.u32 [#allocation10], 4
      %s384 = int_to_ptr.vmem [resolvable:$true] %s383
      %386 = dma.vmem_to_hbm [thread:$0]  %s384, 64, %s7, [#allocation4]
    $region49: #{tpu_custom_call.1} parent=1 // pred_fallthru
      _
    // Predicated region
    $region50: #{tpu_custom_call.1} parent=1 // pred_check
      _
    $region51: #{tpu_custom_call.1} parent=1 // pred_check_branch
      %388 = sbr.rel (0) target = $region53
    $region52: #{tpu_custom_call.1} parent=1 // pred_region
      %389 = dma.done [#allocation4], 64
    $region53: #{tpu_custom_call.1} parent=1 // pred_fallthru
      _
    %390 = vsyncpa [#allocation3], 1
    %391 = vsyncpa [#allocation6], 1
    %392 = vsyncpa [#allocation9], 1
    %393 = vsyncpa [#allocation4], 1

// kernel: tpu_custom_call.1
$region0: #{tpu_custom_call.1}
  #allocation0 [shape = 'u32[]', space=smem, size = 0x4, offset = 0x4, fixed_abs, tag = 'smem constant byte address 0x4 - core index']
  #allocation1 [shape = 'u32[144,128]{1,0:T(1,128)}', space=vmem, size = 0x12000, scoped, tag = 'internal scratch']
  %s0 = inlined_call_operand.hbm [shape: bf16[8,32], index: 0, kind: input, shape index: {}]
  %s1 = inlined_call_operand.hbm [shape: bf16[32,128], index: 1, kind: input, shape index: {}]
  %s2 = inlined_call_operand.vmem [shape: f32[1,128], index: 2, kind: input, shape index: {}]
  %s3 = inlined_call_operand.hbm [shape: bf16[128,128], index: 3, kind: input, shape index: {}]
  %s4 = inlined_call_operand.vmem [shape: f32[1,128], index: 4, kind: input, shape index: {}]
  %s5 = inlined_call_operand.hbm [shape: bf16[128,128], index: 5, kind: input, shape index: {}]
  %s6 = inlined_call_operand.vmem [shape: f32[1,128], index: 6, kind: input, shape index: {}]
  %s7 = inlined_call_operand.hbm [shape: bf16[8,128], index: 7, kind: output, shape index: {}]
  %s8 = sld [smem:[#allocation0]]
  $region54: #{tpu_custom_call.1} parent=0
    _
  %s10 = ssub.s32 1, %s8
  %s11 = scalar_select 0, %s10, %s8
  $region1: #{tpu_custom_call.1} parent=0
    #allocation2 [shape = 'u8[2048]{0}', space=vmem, size = 0x800, scoped, tag = 'input window, operand 0, single buffered']
    #allocation3 [shape = 's32[1]{0}', space=sflag, size = 0x4, scoped, tag = 'scoped memory for tpu_custom_call.1']
    #allocation4 [shape = 's32[1]{0}', space=sflag, size = 0x4, scoped, tag = 'scoped memory for tpu_custom_call.1']
    #allocation5 [shape = 'u8[8192]{0}', space=vmem, size = 0x2000, scoped, tag = 'input window, operand 1, single buffered']
    #allocation6 [shape = 's32[1]{0}', space=sflag, size = 0x4, scoped, tag = 'scoped memory for tpu_custom_call.1']
    #allocation7 [shape = 'u8[32768]{0}', space=vmem, size = 0x8000, scoped, tag = 'input window, operand 3, single buffered']
    #allocation8 [shape = 'u8[32768]{0}', space=vmem, size = 0x8000, scoped, tag = 'input window, operand 5, single buffered']
    #allocation9 [shape = 's32[1]{0}', space=sflag, size = 0x4, scoped, tag = 'scoped memory for tpu_custom_call.1']
    #allocation10 [shape = 'u8[2048]{0}', space=vmem, size = 0x800, scoped, tag = 'output window, operand 0, single buffered']
    %12 = vsyncpa [#allocation3], 0
    %13 = vsyncpa [#allocation6], 0
    %14 = vsyncpa [#allocation9], 0
    %15 = vsyncpa [#allocation4], 0
    // Predicated region
    $region2: #{tpu_custom_call.1} parent=1 // pred_check
      _
    $region3: #{tpu_custom_call.1} parent=1 // pred_check_branch
      %17 = sbr.rel (0) target = $region5
    $region4: #{tpu_custom_call.1} parent=1 // pred_region
      %s19 = ssub.s32 64, 64
      %20 = vsyncadd [#allocation3], %s19
      %s22 = sshll.u32 [#allocation2], 4
      %s23 = int_to_ptr.vmem [resolvable:$true] %s22
      %25 = dma.hbm_to_vmem [thread:$0]  %s0, 64, %s23, [#allocation3]
    $region5: #{tpu_custom_call.1} parent=1 // pred_fallthru
      _
    // Predicated region
    $region6: #{tpu_custom_call.1} parent=1 // pred_check
      _
    $region7: #{tpu_custom_call.1} parent=1 // pred_check_branch
      %27 = sbr.rel (0) target = $region9
    $region8: #{tpu_custom_call.1} parent=1 // pred_region
      %s29 = ssub.s32 256, 256
      %30 = vsyncadd [#allocation6], %s29
      %s31 = sshll.u32 [#allocation5], 4
      %s32 = int_to_ptr.vmem [resolvable:$true] %s31
      %37 = dma.hbm_to_vmem [thread:$0]  %s1, 256, %s32, [#allocation6], 64, 64, 4
    $region9: #{tpu_custom_call.1} parent=1 // pred_fallthru
      _
    // Predicated region
    $region10: #{tpu_custom_call.1} parent=1 // pred_check
      _
    $region11: #{tpu_custom_call.1} parent=1 // pred_check_branch
      %39 = sbr.rel (0) target = $region13
    $region12: #{tpu_custom_call.1} parent=1 // pred_region
      _
    $region13: #{tpu_custom_call.1} parent=1 // pred_fallthru
      _
    // Predicated region
    $region14: #{tpu_custom_call.1} parent=1 // pred_check
      _
    $region15: #{tpu_custom_call.1} parent=1 // pred_check_branch
      %41 = sbr.rel (0) target = $region17
    $region16: #{tpu_custom_call.1} parent=1 // pred_region
      %s43 = ssub.s32 1024, 1024
      %44 = vsyncadd [#allocation6], %s43
      %s45 = sshll.u32 [#allocation7], 4
      %s46 = int_to_ptr.vmem [resolvable:$true] %s45
      %51 = dma.hbm_to_vmem [thread:$0]  %s3, 1024, %s46, [#allocation6], 64, 64, 4
    $region17: #{tpu_custom_call.1} parent=1 // pred_fallthru
      _
    // Predicated region
    $region18: #{tpu_custom_call.1} parent=1 // pred_check
      _
    $region19: #{tpu_custom_call.1} parent=1 // pred_check_branch
      %53 = sbr.rel (0) target = $region21
    $region20: #{tpu_custom_call.1} parent=1 // pred_region
      _
    $region21: #{tpu_custom_call.1} parent=1 // pred_fallthru
      _
    // Predicated region
    $region22: #{tpu_custom_call.1} parent=1 // pred_check
      _
    $region23: #{tpu_custom_call.1} parent=1 // pred_check_branch
      %55 = sbr.rel (0) target = $region25
    $region24: #{tpu_custom_call.1} parent=1 // pred_region
      %s57 = ssub.s32 1024, 1024
      %58 = vsyncadd [#allocation9], %s57
      %s59 = sshll.u32 [#allocation8], 4
      %s60 = int_to_ptr.vmem [resolvable:$true] %s59
      %65 = dma.hbm_to_vmem [thread:$0]  %s5, 1024, %s60, [#allocation9], 64, 64, 4
    $region25: #{tpu_custom_call.1} parent=1 // pred_fallthru
      _
    // Predicated region
    $region26: #{tpu_custom_call.1} parent=1 // pred_check
      _
    $region27: #{tpu_custom_call.1} parent=1 // pred_check_branch
      %67 = sbr.rel (0) target = $region29
    $region28: #{tpu_custom_call.1} parent=1 // pred_region
      _
    $region29: #{tpu_custom_call.1} parent=1 // pred_fallthru
      _
    // Predicated region
    $region30: #{tpu_custom_call.1} parent=1 // pred_check
      _
    $region31: #{tpu_custom_call.1} parent=1 // pred_check_branch
      %69 = sbr.rel (0) target = $region33
    $region32: #{tpu_custom_call.1} parent=1 // pred_region
      %70 = dma.done [#allocation3], 64
    $region33: #{tpu_custom_call.1} parent=1 // pred_fallthru
      _
    // Predicated region
    $region34: #{tpu_custom_call.1} parent=1 // pred_check
      _
    $region35: #{tpu_custom_call.1} parent=1 // pred_check_branch
      %72 = sbr.rel (0) target = $region37
    $region36: #{tpu_custom_call.1} parent=1 // pred_region
      %73 = dma.done [#allocation6], 256
    $region37: #{tpu_custom_call.1} parent=1 // pred_fallthru
      _
    // Predicated region
    $region38: #{tpu_custom_call.1} parent=1 // pred_check
      _
    $region39: #{tpu_custom_call.1} parent=1 // pred_check_branch
      %75 = sbr.rel (0) target = $region41
    $region40: #{tpu_custom_call.1} parent=1 // pred_region
      %76 = dma.done [#allocation6], 1024
    $region41: #{tpu_custom_call.1} parent=1 // pred_fallthru
      _
    // Predicated region
    $region42: #{tpu_custom_call.1} parent=1 // pred_check
      _
    $region43: #{tpu_custom_call.1} parent=1 // pred_check_branch
      %78 = sbr.rel (0) target = $region45
    $region44: #{tpu_custom_call.1} parent=1 // pred_region
      %79 = dma.done [#allocation9], 1024
    $region45: #{tpu_custom_call.1} parent=1 // pred_fallthru
      _
    %v81 = vld [vmem:[#allocation2] sm:$0xf]
    %v82 = vld [vmem:[#allocation5] sm:$0xf]
    %v83 = vld [vmem:[#allocation5 + $0x4] sm:$0xf]
    %v84 = vld [vmem:[#allocation5 + $0x8] sm:$0xf]
    %v85 = vld [vmem:[#allocation5 + $0xc] sm:$0xf]
    %v86 = vld [vmem:[%s2] sm:$0x1]
    %v88 = vlaneseq
    %v89 = vshrl.u32 %v88, 7
    %v90 = vsub.s32 0, %v89
    %v91 = vrot.slane %v86, %v90
    %v97 = vunpack.c.l.b16 %v82
    %v98 = vunpack.c.l.b16 %v83
    %v99 = vunpack.c.l.b16 %v84
    %v100 = vunpack.c.l.b16 %v85
    %v101 = vpack.c.b16 %v98, %v97
    %v102 = vpack.c.b16 %v100, %v99
    %vm105 = vcmask 261120
    %v107 = vsel %vm105, %v81, 0
    %109 = vmatprep.subr.bf16.mxu0 0
    %110 = vmatpush1.bf16.msra.mxu0 %v101
    %111 = vmatprep.subr.bf16.mxu0 0
    %112 = vmatpush1.bf16.msra.mxu0 %v102
    %113 = vmatprep.subr.bf16.mxu0 0
    %114 = vmatpush1.bf16.msra.mxu0 0
    %115 = vmatprep.subr.bf16.mxu0 0
    %116 = vmatpush1.bf16.msra.mxu0 0
    %117 = vmatprep.subr.bf16.mxu0 0
    %118 = vmatpush1.bf16.msra.mxu0 0
    %119 = vmatprep.subr.bf16.mxu0 0
    %120 = vmatpush1.bf16.msra.mxu0 0
    %121 = vmatprep.subr.bf16.mxu0 0
    %122 = vmatpush1.bf16.msra.mxu0 0
    %123 = vmatprep.subr.bf16.mxu0 0
    %124 = vmatpush1.bf16.msra.mxu0 0
    %125 = vmatprep.subr.bf16.mxu0 0
    %126 = vmatpush1.bf16.msra.mxu0 0
    %127 = vmatprep.subr.bf16.mxu0 0
    %128 = vmatpush1.bf16.msra.mxu0 0
    %129 = vmatprep.subr.bf16.mxu0 0
    %130 = vmatpush1.bf16.msra.mxu0 0
    %131 = vmatprep.subr.bf16.mxu0 0
    %132 = vmatpush1.bf16.msra.mxu0 0
    %133 = vmatprep.subr.bf16.mxu0 0
    %134 = vmatpush1.bf16.msra.mxu0 0
    %135 = vmatprep.subr.bf16.mxu0 0
    %136 = vmatpush1.bf16.msra.mxu0 0
    %137 = vmatprep.subr.bf16.mxu0 0
    %138 = vmatpush1.bf16.msra.mxu0 0
    %139 = vmatprep.subr.bf16.mxu0 0
    %140 = vmatpush1.bf16.msra.mxu0 0
    %141 = vmatprep.mubr.bf16.mxu0 0
    %142 = vmatmul.mubr.bf16.gmra.mrb[0].mxu0 %v107
    %v143 = vpop.f32.mrb[0].mxu0
    %v144 = vadd.f32 %v91, %v143
    %v145 = vpop.f32.mrb[0].mxu0
    %v146 = vpop.f32.mrb[0].mxu0
    %v147 = vpop.f32.mrb[0].mxu0
    %148 = vdwg.mxu0
    %v149 = vpack.c.bf16 %v144, %v144
    %v150 = vtanh.bf16.pop %v149
    %v151 = vld [vmem:[#allocation7] sm:$0xf]
    %v152 = vld [vmem:[#allocation7 + $0x4] sm:$0xf]
    %v153 = vld [vmem:[#allocation7 + $0x8] sm:$0xf]
    %v154 = vld [vmem:[#allocation7 + $0xc] sm:$0xf]
    %v155 = vld [vmem:[#allocation7 + $0x10] sm:$0xf]
    %v156 = vld [vmem:[#allocation7 + $0x14] sm:$0xf]
    %v157 = vld [vmem:[#allocation7 + $0x18] sm:$0xf]
    %v158 = vld [vmem:[#allocation7 + $0x1c] sm:$0xf]
    %v159 = vld [vmem:[#allocation7 + $0x20] sm:$0xf]
    %v160 = vld [vmem:[#allocation7 + $0x24] sm:$0xf]
    %v161 = vld [vmem:[#allocation7 + $0x28] sm:$0xf]
    %v162 = vld [vmem:[#allocation7 + $0x2c] sm:$0xf]
    %v163 = vld [vmem:[#allocation7 + $0x30] sm:$0xf]
    %v164 = vld [vmem:[#allocation7 + $0x34] sm:$0xf]
    %v165 = vld [vmem:[#allocation7 + $0x38] sm:$0xf]
    %v166 = vld [vmem:[#allocation7 + $0x3c] sm:$0xf]
    %v167 = vld [vmem:[%s4] sm:$0x1]
    %v169 = vlaneseq
    %v170 = vshrl.u32 %v169, 7
    %v171 = vsub.s32 0, %v170
    %v172 = vrot.slane %v167, %v171
    %v190 = vunpack.c.l.b16 %v151
    %v191 = vunpack.c.l.b16 %v152
    %v192 = vunpack.c.l.b16 %v153
    %v193 = vunpack.c.l.b16 %v154
    %v194 = vunpack.c.l.b16 %v155
    %v195 = vunpack.c.l.b16 %v156
    %v196 = vunpack.c.l.b16 %v157
    %v197 = vunpack.c.l.b16 %v158
    %v198 = vunpack.c.l.b16 %v159
    %v199 = vunpack.c.l.b16 %v160
    %v200 = vunpack.c.l.b16 %v161
    %v201 = vunpack.c.l.b16 %v162
    %v202 = vunpack.c.l.b16 %v163
    %v203 = vunpack.c.l.b16 %v164
    %v204 = vunpack.c.l.b16 %v165
    %v205 = vunpack.c.l.b16 %v166
    %v206 = vpack.c.b16 %v191, %v190
    %v207 = vpack.c.b16 %v193, %v192
    %v208 = vpack.c.b16 %v195, %v194
    %v209 = vpack.c.b16 %v197, %v196
    %v210 = vpack.c.b16 %v199, %v198
    %v211 = vpack.c.b16 %v201, %v200
    %v212 = vpack.c.b16 %v203, %v202
    %v213 = vpack.c.b16 %v205, %v204
    %222 = vmatprep.subr.bf16.mxu0 0
    %223 = vmatpush1.bf16.msra.mxu0 %v206
    %224 = vmatprep.subr.bf16.mxu0 0
    %225 = vmatpush1.bf16.msra.mxu0 %v207
    %226 = vmatprep.subr.bf16.mxu0 0
    %227 = vmatpush1.bf16.msra.mxu0 %v208
    %228 = vmatprep.subr.bf16.mxu0 0
    %229 = vmatpush1.bf16.msra.mxu0 %v209
    %230 = vmatprep.subr.bf16.mxu0 0
    %231 = vmatpush1.bf16.msra.mxu0 %v210
    %232 = vmatprep.subr.bf16.mxu0 0
    %233 = vmatpush1.bf16.msra.mxu0 %v211
    %234 = vmatprep.subr.bf16.mxu0 0
    %235 = vmatpush1.bf16.msra.mxu0 %v212
    %236 = vmatprep.subr.bf16.mxu0 0
    %237 = vmatpush1.bf16.msra.mxu0 %v213
    %238 = vmatprep.subr.bf16.mxu0 0
    %239 = vmatpush1.bf16.msra.mxu0 0
    %240 = vmatprep.subr.bf16.mxu0 0
    %241 = vmatpush1.bf16.msra.mxu0 0
    %242 = vmatprep.subr.bf16.mxu0 0
    %243 = vmatpush1.bf16.msra.mxu0 0
    %244 = vmatprep.subr.bf16.mxu0 0
    %245 = vmatpush1.bf16.msra.mxu0 0
    %246 = vmatprep.subr.bf16.mxu0 0
    %247 = vmatpush1.bf16.msra.mxu0 0
    %248 = vmatprep.subr.bf16.mxu0 0
    %249 = vmatpush1.bf16.msra.mxu0 0
    %250 = vmatprep.subr.bf16.mxu0 0
    %251 = vmatpush1.bf16.msra.mxu0 0
    %252 = vmatprep.subr.bf16.mxu0 0
    %253 = vmatpush1.bf16.msra.mxu0 0
    %254 = vmatprep.mubr.bf16.mxu0 0
    %255 = vmatmul.mubr.bf16.gmra.mrb[0].mxu0 %v150
    %v256 = vpop.f32.mrb[0].mxu0
    %v257 = vadd.f32 %v172, %v256
    %v258 = vpop.f32.mrb[0].mxu0
    %v259 = vpop.f32.mrb[0].mxu0
    %v260 = vpop.f32.mrb[0].mxu0
    %261 = vdwg.mxu0
    %v262 = vpack.c.bf16 %v257, %v257
    %v263 = vtanh.bf16.pop %v262
    %v264 = vld [vmem:[#allocation8] sm:$0xf]
    %v265 = vld [vmem:[#allocation8 + $0x4] sm:$0xf]
    %v266 = vld [vmem:[#allocation8 + $0x8] sm:$0xf]
    %v267 = vld [vmem:[#allocation8 + $0xc] sm:$0xf]
    %v268 = vld [vmem:[#allocation8 + $0x10] sm:$0xf]
    %v269 = vld [vmem:[#allocation8 + $0x14] sm:$0xf]
    %v270 = vld [vmem:[#allocation8 + $0x18] sm:$0xf]
    %v271 = vld [vmem:[#allocation8 + $0x1c] sm:$0xf]
    %v272 = vld [vmem:[#allocation8 + $0x20] sm:$0xf]
    %v273 = vld [vmem:[#allocation8 + $0x24] sm:$0xf]
    %v274 = vld [vmem:[#allocation8 + $0x28] sm:$0xf]
    %v275 = vld [vmem:[#allocation8 + $0x2c] sm:$0xf]
    %v276 = vld [vmem:[#allocation8 + $0x30] sm:$0xf]
    %v277 = vld [vmem:[#allocation8 + $0x34] sm:$0xf]
    %v278 = vld [vmem:[#allocation8 + $0x38] sm:$0xf]
    %v279 = vld [vmem:[#allocation8 + $0x3c] sm:$0xf]
    %v280 = vld [vmem:[%s6] sm:$0x1]
    %v282 = vlaneseq
    %v283 = vshrl.u32 %v282, 7
    %v284 = vsub.s32 0, %v283
    %v285 = vrot.slane %v280, %v284
    %v303 = vunpack.c.l.b16 %v264
    %v304 = vunpack.c.l.b16 %v265
    %v305 = vunpack.c.l.b16 %v266
    %v306 = vunpack.c.l.b16 %v267
    %v307 = vunpack.c.l.b16 %v268
    %v308 = vunpack.c.l.b16 %v269
    %v309 = vunpack.c.l.b16 %v270
    %v310 = vunpack.c.l.b16 %v271
    %v311 = vunpack.c.l.b16 %v272
    %v312 = vunpack.c.l.b16 %v273
    %v313 = vunpack.c.l.b16 %v274
    %v314 = vunpack.c.l.b16 %v275
    %v315 = vunpack.c.l.b16 %v276
    %v316 = vunpack.c.l.b16 %v277
    %v317 = vunpack.c.l.b16 %v278
    %v318 = vunpack.c.l.b16 %v279
    %v319 = vpack.c.b16 %v304, %v303
    %v320 = vpack.c.b16 %v306, %v305
    %v321 = vpack.c.b16 %v308, %v307
    %v322 = vpack.c.b16 %v310, %v309
    %v323 = vpack.c.b16 %v312, %v311
    %v324 = vpack.c.b16 %v314, %v313
    %v325 = vpack.c.b16 %v316, %v315
    %v326 = vpack.c.b16 %v318, %v317
    %335 = vmatprep.subr.bf16.mxu0 0
    %336 = vmatpush1.bf16.msra.mxu0 %v319
    %337 = vmatprep.subr.bf16.mxu0 0
    %338 = vmatpush1.bf16.msra.mxu0 %v320
    %339 = vmatprep.subr.bf16.mxu0 0
    %340 = vmatpush1.bf16.msra.mxu0 %v321
    %341 = vmatprep.subr.bf16.mxu0 0
    %342 = vmatpush1.bf16.msra.mxu0 %v322
    %343 = vmatprep.subr.bf16.mxu0 0
    %344 = vmatpush1.bf16.msra.mxu0 %v323
    %345 = vmatprep.subr.bf16.mxu0 0
    %346 = vmatpush1.bf16.msra.mxu0 %v324
    %347 = vmatprep.subr.bf16.mxu0 0
    %348 = vmatpush1.bf16.msra.mxu0 %v325
    %349 = vmatprep.subr.bf16.mxu0 0
    %350 = vmatpush1.bf16.msra.mxu0 %v326
    %351 = vmatprep.subr.bf16.mxu0 0
    %352 = vmatpush1.bf16.msra.mxu0 0
    %353 = vmatprep.subr.bf16.mxu0 0
    %354 = vmatpush1.bf16.msra.mxu0 0
    %355 = vmatprep.subr.bf16.mxu0 0
    %356 = vmatpush1.bf16.msra.mxu0 0
    %357 = vmatprep.subr.bf16.mxu0 0
    %358 = vmatpush1.bf16.msra.mxu0 0
    %359 = vmatprep.subr.bf16.mxu0 0
    %360 = vmatpush1.bf16.msra.mxu0 0
    %361 = vmatprep.subr.bf16.mxu0 0
    %362 = vmatpush1.bf16.msra.mxu0 0
    %363 = vmatprep.subr.bf16.mxu0 0
    %364 = vmatpush1.bf16.msra.mxu0 0
    %365 = vmatprep.subr.bf16.mxu0 0
    %366 = vmatpush1.bf16.msra.mxu0 0
    %367 = vmatprep.mubr.bf16.mxu0 0
    %368 = vmatmul.mubr.bf16.gmra.mrb[0].mxu0 %v263
    %v369 = vpop.f32.mrb[0].mxu0
    %v370 = vadd.f32 %v285, %v369
    %v371 = vpop.f32.mrb[0].mxu0
    %v372 = vpop.f32.mrb[0].mxu0
    %v373 = vpop.f32.mrb[0].mxu0
    %374 = vdwg.mxu0
    %v375 = vpack.c.bf16 %v370, %v370
    %376 = vst [vmem:[#allocation10] sm:$0xf] %v375
    // Predicated region
    $region46: #{tpu_custom_call.1} parent=1 // pred_check
      _
    $region47: #{tpu_custom_call.1} parent=1 // pred_check_branch
      %378 = sbr.rel (0) target = $region49
    $region48: #{tpu_custom_call.1} parent=1 // pred_region
      %s380 = ssub.s32 64, 64
      %381 = vsyncadd [#allocation4], %s380
      %s383 = sshll.u32 [#allocation10], 4
      %s384 = int_to_ptr.vmem [resolvable:$true] %s383
      %386 = dma.vmem_to_hbm [thread:$0]  %s384, 64, %s7, [#allocation4]
    $region49: #{tpu_custom_call.1} parent=1 // pred_fallthru
      _
    // Predicated region
    $region50: #{tpu_custom_call.1} parent=1 // pred_check
      _
    $region51: #{tpu_custom_call.1} parent=1 // pred_check_branch
      %388 = sbr.rel (0) target = $region53
    $region52: #{tpu_custom_call.1} parent=1 // pred_region
      %389 = dma.done [#allocation4], 64
    $region53: #{tpu_custom_call.1} parent=1 // pred_fallthru
      _
    %390 = vsyncpa [#allocation3], 1
    %391 = vsyncpa [#allocation6], 1
    %392 = vsyncpa [#allocation9], 1
    %393 = vsyncpa [#allocation4], 1

</llo_original>
